<compile_context>
chip_gen: v5e
topology: v5e:2x2
jax: 0.10.0
libtpu: 0.0.40
codegen_flags: <defaults>
</compile_context>

<pallas_src>
import functools

import jax
import jax.numpy as jnp
import numpy as np
from jax.experimental import pallas as pl
from jax.experimental.pallas import tpu as pltpu


_CHUNK = 1024        # in-kernel lane chunk for the fused path (multiple of 128)
_ITEMSIZE = 4        # float32


# --------------------------- budgets / tiling ------------------------------ #

def _vmem_budgets():
    """Generation-aware (vmem_limit_bytes, block_budget_bytes)."""
    cap = None
    try:
        cap = int(getattr(pltpu.get_tpu_info(), "vmem_capacity_bytes", 0)) or None
    except Exception:
        cap = None
    if cap is None:
        cap = 64 * 1024 * 1024            # conservative: assume v7x-sized VMEM
    vmem_limit = max(16 << 20, min(112 << 20, cap - (16 << 20)))
    block_budget = (vmem_limit * 2) // 3  # ~75 MiB on v5e/v6e, 32 MiB on v7x
    return vmem_limit, block_budget


def _pick_ts(S, C, block_budget_bytes):
    """Spatial tile (lanes) for the two-pass path: 512-2048 when it fits."""
    ts_cap = (block_budget_bytes // (7 * C * _ITEMSIZE)) // 128 * 128
    ts = int(max(128, min(2048, ts_cap)))
    return S if S <= ts else ts           # full extent is always a legal block


# ------------------------------- kernels ----------------------------------- #

def _fused_kernel(x_ref, w1t_ref, b1_ref, w2_ref, b2_ref, wsse_ref, bsse_ref,
                  out_ref, *, inv_s, chunk):
    """Single-pass SCSE for one batch element: pool + cSE + sSE + gating.

    All (C, S)-sized math is chunked over <= `chunk` lanes so no full-slab
    temporaries are materialised in VMEM; only the x / out blocks are slab
    sized, keeping HBM traffic at 1 read + 1 write of x.
    """
    C = x_ref.shape[1]
    S = x_ref.shape[2]
    n_full = S // chunk
    rem = S - n_full * chunk

    wsse = wsse_ref[...]                                     # (C, 1)
    bsse = bsse_ref[0]                                       # SMEM scalar

    # -- global average pool over spatial (lane reduce), chunked ------------ #
    def pool_chunk(off, size, acc):
        xc = x_ref[0, :, pl.ds(off, size)].astype(jnp.float32)
        return acc + jnp.sum(xc, axis=1, keepdims=True)

    acc = jnp.zeros((C, 1), jnp.float32)
    if n_full > 0:
        acc = jax.lax.fori_loop(
            0, n_full,
            lambda i, a: pool_chunk(pl.multiple_of(i * chunk, chunk), chunk, a),
            acc)
    if rem > 0:
        acc = pool_chunk(n_full * chunk, rem, acc)
    pooled = acc * inv_s                                     # (C, 1)

    # -- cSE squeeze MLP on the VPU (no MXU round trip, no transposes) ------ #
    # h[j]   = relu(sum_c w1[j, c] * pooled[c] + b1[j])    -> (1, hidden)
    # cse[c] = sigmoid(sum_j w2[c, j] * h[j]   + b2[c])    -> (C, 1)
    h = jnp.maximum(
        jnp.sum(w1t_ref[...] * pooled, axis=0, keepdims=True) + b1_ref[...], 0.0)
    cse = jax.nn.sigmoid(
        jnp.sum(w2_ref[...] * h, axis=1, keepdims=True) + b2_ref[...])

    # -- sSE gate + output, chunked over the lane axis ----------------------- #
    # x*cSE + x*sSE == x * (cSE + sSE)
    def gate_chunk(off, size):
        xc = x_ref[0, :, pl.ds(off, size)]
        sse = jax.nn.sigmoid(
            jnp.sum(xc.astype(jnp.float32) * wsse, axis=0, keepdims=True) + bsse)
        out_ref[0, :, pl.ds(off, size)] = (xc * (cse + sse)).astype(out_ref.dtype)

    if n_full > 0:
        def body(i, carry):
            gate_chunk(pl.multiple_of(i * chunk, chunk), chunk)
            return carry
        jax.lax.fori_loop(0, n_full, body, 0)
    if rem > 0:
        gate_chunk(n_full * chunk, rem)


def _pool_kernel(x_ref, out_ref, *, inv_s, s_total, ts):
    """Two-pass path, pass 1: masked global average pool over spatial tiles."""
    s = pl.program_id(1)

    @pl.when(s == 0)
    def _():
        out_ref[...] = jnp.zeros_like(out_ref)

    x = x_ref[...].astype(jnp.float32)                       # (1, C, TS)
    # Mask lanes past the end of the volume (the last tile may be partial and
    # padded with garbage by the boundary DMA).
    lane = jax.lax.broadcasted_iota(jnp.int32, x.shape, 2)
    x = jnp.where(lane < (s_total - s * ts), x, 0.0)
    out_ref[...] += jnp.sum(x, axis=2, keepdims=True)

    @pl.when(s == pl.num_programs(1) - 1)
    def _():
        out_ref[...] *= inv_s


def _apply_kernel(x_ref, cse_ref, wsse_ref, bsse_ref, out_ref):
    """Two-pass path, pass 2: apply precomputed cSE gate + in-kernel sSE gate.

    Garbage lanes of a partial boundary tile never contaminate valid lanes
    (all math is lane-elementwise / sublane-reduced) and their output lanes
    are dropped by the clipped boundary store.
    """
    x = x_ref[0]                                             # (C, TS)
    cse = cse_ref[0]                                         # (C, 1)
    sse = jax.nn.sigmoid(
        jnp.sum(x.astype(jnp.float32) * wsse_ref[...], axis=0, keepdims=True)
        + bsse_ref[0])                                       # (1, TS)
    out_ref[0] = (x * (cse + sse)).astype(out_ref.dtype)


# ------------------------------- wrapper ----------------------------------- #

def scse_attention(x_ncdhw, params, *, block_budget_bytes=None,
                   vmem_limit_bytes=None):
    """x_ncdhw: (N, C, D, H, W) float32. params = (w1, b1, w2, b2, wsse, bsse)."""
    w1, b1, w2, b2, wsse, bsse = params
    N, C, D, H, W = x_ncdhw.shape
    S = D * H * W
    hidden = w1.shape[0]

    auto_limit, auto_budget = _vmem_budgets()
    if vmem_limit_bytes is None:
        vmem_limit_bytes = auto_limit
    if block_budget_bytes is None:
        block_budget_bytes = auto_budget

    # Native layout: (N, C, S) -- pure reshape, spatial sits on the 128-lane
    # axis (lane-dense, unmasked stores); no transposes / extra HBM passes.
    x = x_ncdhw.reshape(N, C, S)
    out_dtype = x.dtype

    smem_spec = pl.BlockSpec(memory_space=pltpu.MemorySpace.SMEM)
    wsse_col = wsse.reshape(C, 1)

    # Fused-path VMEM estimate: double-buffered x/out slabs + chunk temporaries
    # + weight blocks + headroom (the old 4*C*S estimate ignored temporaries).
    chunk = max(128, min(_CHUNK, ((S + 127) // 128) * 128))
    fused_bytes = (4 * C * S + 8 * C * chunk
                   + 6 * C * max(hidden, 1)) * _ITEMSIZE + (1 << 20)
    slab_bytes = C * S * _ITEMSIZE

    # For N == 1 there is no cross-batch pipelining to hide the whole-slab
    # prologue/epilogue DMA of the single fused grid step (and on v7x a 1-step
    # parallel grid leaves one TensorCore idle), so stream the two-pass path.
    # TODO(synk): replace with an in-kernel S-tile double-buffered DMA pipeline
    # (memory_space=pl.ANY + manual make_async_copy) to keep 1R+1W at N == 1.
    prefer_two_pass = (N == 1) and (slab_bytes >= (8 << 20))

    if fused_bytes <= block_budget_bytes and not prefer_two_pass:
        # -------- fused single-pass path: 1 HBM read + 1 HBM write of x ---- #
        out = pl.pallas_call(
            functools.partial(_fused_kernel, inv_s=1.0 / S, chunk=chunk),
            out_shape=jax.ShapeDtypeStruct((N, C, S), out_dtype),
            grid=(N,),
            in_specs=[
                pl.BlockSpec((1, C, S), lambda n: (n, 0, 0)),    # x
                pl.BlockSpec((C, hidden), lambda n: (0, 0)),     # w1.T
                pl.BlockSpec((1, hidden), lambda n: (0, 0)),     # b1 (row)
                pl.BlockSpec((C, hidden), lambda n: (0, 0)),     # w2
                pl.BlockSpec((C, 1), lambda n: (0, 0)),          # b2 (col)
                pl.BlockSpec((C, 1), lambda n: (0, 0)),          # wsse (col)
                smem_spec,                                       # bsse (SMEM)
            ],
            out_specs=pl.BlockSpec((1, C, S), lambda n: (n, 0, 0)),
            compiler_params=pltpu.CompilerParams(
                dimension_semantics=("parallel",),
                vmem_limit_bytes=vmem_limit_bytes),
        )(x, w1.T, b1.reshape(1, hidden), w2, b2.reshape(C, 1), wsse_col, bsse)
        return out.reshape(N, C, D, H, W)

    # -------- two-pass streaming fallback (large slabs / N == 1) ----------- #
    TS = _pick_ts(S, C, block_budget_bytes)
    n_s = pl.cdiv(S, TS)

    # Pass 1: global average pooling over spatial tiles (partial tile masked).
    # Gate kept as (N, C, 1); a lane-dense (N, 1, C) layout would avoid the
    # 1-lane masked accumulator store but costs a sublane->lane relayout per
    # tile for these tiny tensors.
    pooled = pl.pallas_call(
        functools.partial(_pool_kernel, inv_s=1.0 / S, s_total=S, ts=TS),
        out_shape=jax.ShapeDtypeStruct((N, C, 1), jnp.float32),
        grid=(N, n_s),
        in_specs=[pl.BlockSpec((1, C, TS), lambda n, s: (n, 0, s))],
        out_specs=pl.BlockSpec((1, C, 1), lambda n, s: (n, 0, 0)),
        compiler_params=pltpu.CompilerParams(
            dimension_semantics=("parallel", "arbitrary"),
            vmem_limit_bytes=vmem_limit_bytes),
    )(x)

    # cSE squeeze MLP hoisted out of the grid: tiny (N, C) math in plain JAX.
    p = pooled[:, :, 0].astype(jnp.float32)                    # (N, C)
    h = jnp.maximum(p @ w1.T + b1, 0.0)                        # (N, hidden)
    cse = jax.nn.sigmoid(h @ w2.T + b2)[:, :, None]            # (N, C, 1)

    # Pass 2: apply cSE gate + in-kernel sSE gate.
    out = pl.pallas_call(
        _apply_kernel,
        out_shape=jax.ShapeDtypeStruct((N, C, S), out_dtype),
        grid=(N, n_s),
        in_specs=[
            pl.BlockSpec((1, C, TS), lambda n, s: (n, 0, s)),   # x
            pl.BlockSpec((1, C, 1), lambda n, s: (n, 0, 0)),    # cse gate
            pl.BlockSpec((C, 1), lambda n, s: (0, 0)),          # wsse
            smem_spec,                                          # bsse
        ],
        out_specs=pl.BlockSpec((1, C, TS), lambda n, s: (n, 0, s)),
        compiler_params=pltpu.CompilerParams(
            dimension_semantics=("parallel", "parallel"),
            vmem_limit_bytes=vmem_limit_bytes),
    )(x, cse, wsse_col, bsse)
    return out.reshape(N, C, D, H, W)


def attention_forward(x, name, params=None, **kwargs):
    """Mirror of Attention.forward: Identity if name is None, SCSE if 'scse'."""
    if name is None:
        return x
    elif name == 'scse':
        return scse_attention(x, params, **kwargs)
    else:
        raise ValueError('Attention {} is not implemented'.format(name))


# ------------------------------ reference ---------------------------------- #

def reference_scse(x, params):
    w1, b1, w2, b2, wsse, bsse = params
    pooled = jnp.mean(x, axis=(2, 3, 4))                       # (N, C)
    h = jnp.maximum(pooled @ w1.T + b1, 0.0)                   # (N, hidden)
    cse = jax.nn.sigmoid(h @ w2.T + b2)                        # (N, C)
    sse = jax.nn.sigmoid(jnp.einsum('ncdhw,c->ndhw', x, wsse[:, 0]) + bsse[0])
    return x * cse[:, :, None, None, None] + x * sse[:, None, :, :, :]


# --------------------------------- main ------------------------------------ #

if __name__ == "__main__":
    key = jax.random.PRNGKey(0)

    def make_params(k, C, reduction=16):
        hidden = max(1, C // reduction)
        ks = jax.random.split(k, 6)
        # Conv3d weights with kernel size 1 are equivalent to (out, in) matrices.
        w1 = jax.random.normal(ks[0], (hidden, C), jnp.float32) * 0.1    # cSE conv1
        b1 = jax.random.normal(ks[1], (hidden,), jnp.float32) * 0.1
        w2 = jax.random.normal(ks[2], (C, hidden), jnp.float32) * 0.1    # cSE conv2
        b2 = jax.random.normal(ks[3], (C,), jnp.float32) * 0.1
        wsse = jax.random.normal(ks[4], (C, 1), jnp.float32) * 0.1       # sSE conv
        bsse = jax.random.normal(ks[5], (1,), jnp.float32) * 0.1
        return (w1, b1, w2, b2, wsse, bsse)

    k1, k2, k3, k4 = jax.random.split(key, 4)

    # Case A/B: N=2, C=32, S = 8*8*8 = 512 (multiple of 128).
    params_a = make_params(k1, 32)
    xa = jax.random.normal(k2, (2, 32, 8, 8, 8), jnp.float32)
    ref_a = reference_scse(xa, params_a)

    # Identity path.
    ident = jax.block_until_ready(attention_forward(xa, None))
    np.testing.assert_allclose(np.asarray(ident), np.asarray(xa))

    # Fused single-pass path (generation-aware default budget).
    out_fused = jax.block_until_ready(attention_forward(xa, 'scse', params_a))
    np.testing.assert_allclose(np.asarray(out_fused), np.asarray(ref_a),
                               atol=1e-5, rtol=1e-5)

    # Two-pass streaming path (forced with a tiny block budget).
    out_two = jax.block_until_ready(
        attention_forward(xa, 'scse', params_a, block_budget_bytes=64 * 1024))
    np.testing.assert_allclose(np.asarray(out_two), np.asarray(ref_a),
                               atol=1e-5, rtol=1e-5)

    # Case C/D: N=1, C=16, S = 5*7*7 = 245 (NOT a multiple of 128) exercises
    # the fused tail chunk and the masked partial tiles of the fallback.
    params_c = make_params(k3, 16)
    xc = jax.random.normal(k4, (1, 16, 5, 7, 7), jnp.float32)
    ref_c = reference_scse(xc, params_c)

    out_fused_c = jax.block_until_ready(attention_forward(xc, 'scse', params_c))
    np.testing.assert_allclose(np.asarray(out_fused_c), np.asarray(ref_c),
                               atol=1e-5, rtol=1e-5)

    out_two_c = jax.block_until_ready(
        attention_forward(xc, 'scse', params_c, block_budget_bytes=64 * 1024))
    np.testing.assert_allclose(np.asarray(out_two_c), np.asarray(ref_c),
                               atol=1e-5, rtol=1e-5)

    print("KERNEL_OK")
</pallas_src>

<mosaic_0001>
module attributes {stable_mosaic.version = 11 : i64} {
  func.func @_fused_kernel(%arg0: i32, %arg1: memref<1x32x512xf32, #tpu.memory_space<vmem>>, %arg2: memref<32x2xf32, #tpu.memory_space<vmem>>, %arg3: memref<1x2xf32, #tpu.memory_space<vmem>>, %arg4: memref<32x2xf32, #tpu.memory_space<vmem>>, %arg5: memref<32x1xf32, #tpu.memory_space<vmem>>, %arg6: memref<32x1xf32, #tpu.memory_space<vmem>>, %arg7: memref<1xf32, #tpu.memory_space<smem>>, %arg8: memref<1x32x512xf32, #tpu.memory_space<vmem>>) attributes {dimension_semantics = [#tpu.dimension_semantics<parallel>], iteration_bounds = array<i64: 2>, scalar_prefetch = 0 : i64, scratch_operands = 0 : i64, tpu.core_type = #tpu.core_type<tc>, window_params = [{transform_indices = @transform_0, window_bounds = array<i64: 1, 32, 512>}, {pipeline_mode = #tpu.pipeline_mode<synchronous>, transform_indices = @transform_1, window_bounds = array<i64: 32, 2>}, {pipeline_mode = #tpu.pipeline_mode<synchronous>, transform_indices = @transform_2, window_bounds = array<i64: 1, 2>}, {pipeline_mode = #tpu.pipeline_mode<synchronous>, transform_indices = @transform_3, window_bounds = array<i64: 32, 2>}, {pipeline_mode = #tpu.pipeline_mode<synchronous>, transform_indices = @transform_4, window_bounds = array<i64: 32, 1>}, {pipeline_mode = #tpu.pipeline_mode<synchronous>, transform_indices = @transform_5, window_bounds = array<i64: 32, 1>}, {transform_indices = @transform_6, window_bounds = array<i64: 1>}, {transform_indices = @transform_7, window_bounds = array<i64: 1, 32, 512>}]} {
    %c0 = arith.constant 0 : index
    %c0_0 = arith.constant 0 : index
    %0 = vector.load %arg6[%c0, %c0_0] : memref<32x1xf32, #tpu.memory_space<vmem>>, vector<32x1xf32>
    %c0_1 = arith.constant 0 : index
    %1 = memref.load %arg7[%c0_1] : memref<1xf32, #tpu.memory_space<smem>>
    %cst = arith.constant 0.000000e+00 : f32
    %2 = vector.broadcast %cst : f32 to vector<32x1xf32>
    %c0_i32 = arith.constant 0 : i32
    %c512_i32 = arith.constant 512 : i32
    %3 = arith.muli %c0_i32, %c512_i32 : i32
    %4 = tpu.assume_multiple %3, 512 : i32
    %c0_2 = arith.constant 0 : index
    %c0_3 = arith.constant 0 : index
    %5 = arith.index_cast %4 : i32 to index
    %6 = vector.load %arg1[%c0_2, %c0_3, %5] : memref<1x32x512xf32, #tpu.memory_space<vmem>>, vector<1x32x512xf32>
    %7 = vector.shape_cast %6 : vector<1x32x512xf32> to vector<32x512xf32>
    %cst_4 = arith.constant dense<0.000000e+00> : vector<32xf32>
    %8 = vector.multi_reduction <add>, %7, %cst_4 [1] : vector<32x512xf32> to vector<32xf32>
    %9 = vector.shape_cast %8 : vector<32xf32> to vector<32x1xf32>
    %10 = arith.addf %2, %9 : vector<32x1xf32>
    %c1_i32 = arith.constant 1 : i32
    %cst_5 = arith.constant 0.001953125 : f32
    %11 = vector.broadcast %cst_5 : f32 to vector<32x1xf32>
    %12 = arith.mulf %10, %11 : vector<32x1xf32>
    %c0_6 = arith.constant 0 : index
    %c0_7 = arith.constant 0 : index
    %13 = vector.load %arg2[%c0_6, %c0_7] : memref<32x2xf32, #tpu.memory_space<vmem>>, vector<32x2xf32>
    %14 = vector.broadcast %12 : vector<32x1xf32> to vector<32x2xf32>
    %15 = arith.mulf %13, %14 : vector<32x2xf32>
    %cst_8 = arith.constant dense<0.000000e+00> : vector<2xf32>
    %16 = vector.multi_reduction <add>, %15, %cst_8 [0] : vector<32x2xf32> to vector<2xf32>
    %17 = vector.shape_cast %16 : vector<2xf32> to vector<1x2xf32>
    %c0_9 = arith.constant 0 : index
    %c0_10 = arith.constant 0 : index
    %18 = vector.load %arg3[%c0_9, %c0_10] : memref<1x2xf32, #tpu.memory_space<vmem>>, vector<1x2xf32>
    %19 = arith.addf %17, %18 : vector<1x2xf32>
    %cst_11 = arith.constant 0.000000e+00 : f32
    %20 = vector.broadcast %cst_11 : f32 to vector<1x2xf32>
    %21 = arith.maximumf %19, %20 : vector<1x2xf32>
    %c0_12 = arith.constant 0 : index
    %c0_13 = arith.constant 0 : index
    %22 = vector.load %arg4[%c0_12, %c0_13] : memref<32x2xf32, #tpu.memory_space<vmem>>, vector<32x2xf32>
    %23 = vector.broadcast %21 : vector<1x2xf32> to vector<32x2xf32>
    %24 = arith.mulf %22, %23 : vector<32x2xf32>
    %cst_14 = arith.constant dense<0.000000e+00> : vector<32xf32>
    %25 = vector.multi_reduction <add>, %24, %cst_14 [1] : vector<32x2xf32> to vector<32xf32>
    %26 = vector.shape_cast %25 : vector<32xf32> to vector<32x1xf32>
    %c0_15 = arith.constant 0 : index
    %c0_16 = arith.constant 0 : index
    %27 = vector.load %arg5[%c0_15, %c0_16] : memref<32x1xf32, #tpu.memory_space<vmem>>, vector<32x1xf32>
    %28 = arith.addf %26, %27 : vector<32x1xf32>
    %29 = arith.negf %28 : vector<32x1xf32>
    %30 = math.exp %29 : vector<32x1xf32>
    %cst_17 = arith.constant 1.000000e+00 : f32
    %31 = vector.broadcast %cst_17 : f32 to vector<32x1xf32>
    %32 = arith.addf %31, %30 : vector<32x1xf32>
    %33 = arith.divf %31, %32 : vector<32x1xf32>
    %c0_i32_18 = arith.constant 0 : i32
    %c512_i32_19 = arith.constant 512 : i32
    %34 = arith.muli %c0_i32_18, %c512_i32_19 : i32
    %35 = tpu.assume_multiple %34, 512 : i32
    %c0_20 = arith.constant 0 : index
    %c0_21 = arith.constant 0 : index
    %36 = arith.index_cast %35 : i32 to index
    %37 = vector.load %arg1[%c0_20, %c0_21, %36] : memref<1x32x512xf32, #tpu.memory_space<vmem>>, vector<1x32x512xf32>
    %38 = vector.shape_cast %37 : vector<1x32x512xf32> to vector<32x512xf32>
    %39 = vector.broadcast %0 : vector<32x1xf32> to vector<32x512xf32>
    %40 = arith.mulf %38, %39 : vector<32x512xf32>
    %cst_22 = arith.constant dense<0.000000e+00> : vector<512xf32>
    %41 = vector.multi_reduction <add>, %40, %cst_22 [0] : vector<32x512xf32> to vector<512xf32>
    %42 = vector.shape_cast %41 : vector<512xf32> to vector<1x512xf32>
    %43 = vector.broadcast %1 : f32 to vector<1x512xf32>
    %44 = arith.addf %42, %43 : vector<1x512xf32>
    %45 = arith.negf %44 : vector<1x512xf32>
    %46 = math.exp %45 : vector<1x512xf32>
    %cst_23 = arith.constant 1.000000e+00 : f32
    %47 = vector.broadcast %cst_23 : f32 to vector<1x512xf32>
    %48 = arith.addf %47, %46 : vector<1x512xf32>
    %49 = arith.divf %47, %48 : vector<1x512xf32>
    %50 = vector.broadcast %33 : vector<32x1xf32> to vector<32x512xf32>
    %51 = vector.broadcast %49 : vector<1x512xf32> to vector<32x512xf32>
    %52 = arith.addf %50, %51 : vector<32x512xf32>
    %53 = arith.mulf %38, %52 : vector<32x512xf32>
    %c0_24 = arith.constant 0 : index
    %c0_25 = arith.constant 0 : index
    %54 = arith.index_cast %35 : i32 to index
    %55 = vector.load %arg8[%c0_24, %c0_25, %54] : memref<1x32x512xf32, #tpu.memory_space<vmem>>, vector<1x32x512xf32>
    %56 = vector.shape_cast %55 : vector<1x32x512xf32> to vector<32x512xf32>
    %57 = vector.shape_cast %53 : vector<32x512xf32> to vector<1x32x512xf32>
    tpu.vector_store %arg8[%c0_24, %c0_25, %54], %57 {strides = array<i32>} : memref<1x32x512xf32, #tpu.memory_space<vmem>>, vector<1x32x512xf32>,
    %c1_i32_26 = arith.constant 1 : i32
    return
  }
  func.func @transform_0(%arg0: i32) -> (i32, i32, i32) {
    %c0_i32 = arith.constant 0 : i32
    %c0_i32_0 = arith.constant 0 : i32
    %c0_i32_1 = arith.constant 0 : i32
    return %arg0, %c0_i32, %c0_i32_0 : i32, i32, i32
  }
  func.func @transform_1(%arg0: i32) -> (i32, i32) {
    %c0_i32 = arith.constant 0 : i32
    %c0_i32_0 = arith.constant 0 : i32
    %c0_i32_1 = arith.constant 0 : i32
    return %c0_i32, %c0_i32_0 : i32, i32
  }
  func.func @transform_2(%arg0: i32) -> (i32, i32) {
    %c0_i32 = arith.constant 0 : i32
    %c0_i32_0 = arith.constant 0 : i32
    %c0_i32_1 = arith.constant 0 : i32
    return %c0_i32, %c0_i32_0 : i32, i32
  }
  func.func @transform_3(%arg0: i32) -> (i32, i32) {
    %c0_i32 = arith.constant 0 : i32
    %c0_i32_0 = arith.constant 0 : i32
    %c0_i32_1 = arith.constant 0 : i32
    return %c0_i32, %c0_i32_0 : i32, i32
  }
  func.func @transform_4(%arg0: i32) -> (i32, i32) {
    %c0_i32 = arith.constant 0 : i32
    %c0_i32_0 = arith.constant 0 : i32
    %c0_i32_1 = arith.constant 0 : i32
    return %c0_i32, %c0_i32_0 : i32, i32
  }
  func.func @transform_5(%arg0: i32) -> (i32, i32) {
    %c0_i32 = arith.constant 0 : i32
    %c0_i32_0 = arith.constant 0 : i32
    %c0_i32_1 = arith.constant 0 : i32
    return %c0_i32, %c0_i32_0 : i32, i32
  }
  func.func @transform_6(%arg0: i32) -> i32 {
    %c0_i32 = arith.constant 0 : i32
    %c0_i32_0 = arith.constant 0 : i32
    return %c0_i32 : i32
  }
  func.func @transform_7(%arg0: i32) -> (i32, i32, i32) {
    %c0_i32 = arith.constant 0 : i32
    %c0_i32_0 = arith.constant 0 : i32
    %c0_i32_1 = arith.constant 0 : i32
    return %arg0, %c0_i32, %c0_i32_0 : i32, i32, i32
  }
}

</mosaic_0001>

<llo_original>
// kernel: tpu_custom_call.1
$region0: #{tpu_custom_call.1}
  #allocation0 [shape = 'u32[]', space=smem, size = 0x4, offset = 0x4, fixed_abs, tag = 'smem constant byte address 0x4 - core index']
  #allocation1 [shape = 'u32[72,128]{1,0:T(1,128)}', space=vmem, size = 0x9000, scoped, tag = 'internal scratch']
  #allocation2 [shape = 'f32[1]{0:T(128)S(6)}', space=smem, size = 0x200, scoped, tag = 'scoped memory for tpu_custom_call.1']
  %s0 = inlined_call_operand.hbm [shape: f32[2,32,512], index: 0, kind: input, shape index: {}]
  %s1 = inlined_call_operand.vmem [shape: f32[32,2], index: 1, kind: input, shape index: {}]
  %s2 = inlined_call_operand.vmem [shape: f32[1,2], index: 2, kind: input, shape index: {}]
  %s3 = inlined_call_operand.vmem [shape: f32[32,2], index: 3, kind: input, shape index: {}]
  %s4 = inlined_call_operand.vmem [shape: f32[32,1], index: 4, kind: input, shape index: {}]
  %s5 = inlined_call_operand.vmem [shape: f32[32,1], index: 5, kind: input, shape index: {}]
  %s6 = inlined_call_operand.<no memory space> [shape: f32[1], index: 6, kind: input, shape index: {}]
  %s7 = inlined_call_operand.hbm [shape: f32[2,32,512], index: 7, kind: output, shape index: {}]
  %s8 = sld [smem:[#allocation0]]
  $region65: #{tpu_custom_call.1} parent=0
    _
  %s10 = ssub.s32 1, %s8
  %s11 = scalar_select 0, %s10, %s8
  %12 = sst [smem:[#allocation2]] %s6
  $region1: #{tpu_custom_call.1} parent=0
    #allocation3 [shape = 'u8[131072]{0}', space=vmem, size = 0x20000, scoped, tag = 'input window, operand 0']
    #allocation4 [shape = 's32[2]{0}', space=sflag, size = 0x8, scoped, tag = 'scoped memory for tpu_custom_call.1']
    #allocation5 [shape = 's32[2]{0}', space=sflag, size = 0x8, scoped, tag = 'scoped memory for tpu_custom_call.1']
    #allocation6 [shape = 'u8[131072]{0}', space=vmem, size = 0x20000, scoped, tag = 'output window, operand 0']
    %13 = vsyncpa [#allocation4], 0
    %s14 = scalar_lea.sflag [#allocation4], 1
    %15 = vsyncpa %s14, 0
    %16 = vsyncpa [#allocation5], 0
    %s17 = scalar_lea.sflag [#allocation5], 1
    %18 = vsyncpa %s17, 0
    loop: start=0, step=1, limit=4
    $region2: #{tpu_custom_call.1} parent=1 // loop_pre_header
      _
    $region3: #{tpu_custom_call.1} parent=1 // loop_header
      %s20 = sphi 0, %s24
      %p21 = scmp.ge.s32.totalorder %s20, 4
      %s30 = sphi 0, %s32
      %s33 = sphi 0, %s30
      %s34 = sphi 0, %s33
      %s50 = sphi 0, %s34
      %s54 = sphi 0, %s54
      %s56 = sphi 0, %s54
      %s57 = sphi 0, %s56
      %s71 = sphi 0, %s57
      %s75 = sphi 0, %s75
      %s77 = sphi 0, %s75
      %s78 = sphi 0, %s77
      %s92 = sphi 0, %s78
      %s96 = sphi 0, %s96
      %s98 = sphi 0, %s96
      %s99 = sphi 0, %s98
      %s113 = sphi 0, %s99
      %s117 = sphi 0, %s117
      %s119 = sphi 0, %s117
      %s120 = sphi 0, %s119
      %s134 = sphi 0, %s120
      %s138 = sphi 0, %s138
      %s140 = sphi 0, %s138
      %s141 = sphi 0, %s140
      %s155 = sphi 0, %s141
      %s159 = sphi 0, %s159
      %s161 = sphi 0, %s159
      %s162 = sphi 0, %s161
      %s176 = sphi 0, %s162
      %s182 = sphi 0, %s184
      %s185 = sphi 0, %s182
      %s186 = sphi 0, %s185
      %s202 = sphi 0, %s186
    $region4: #{tpu_custom_call.1} parent=1 // loop_header_branch
      %23 = sbr.rel (%p21) target = $region8
    $region5: #{tpu_custom_call.1} parent=1 // loop_body
      %s25 = ssub.s32 %s20, 1
      %s26 = ssub.s32 %s20, 2
      %s27 = sadd.s32 %s20, 1
      %s28 = ssub.s32 %s20, %s27
      %p29 = scmp.eq.s32.totalorder %s28, 0
      %s31 = sadd.s32 %s30, 1
      %s32 = scalar_select %p29, %s30, %s31
      %p35 = pneg %p29
      %p36 = scmp.eq.s32.totalorder %s20, 1
      %p37 = por %p35, %p36
      %p38 = scmp.ne.s32.totalorder %s30, %s33
      %p39 = scmp.eq.s32.totalorder %s20, 0
      %p40 = por %p38, %p39
      %p41 = scmp.ne.s32.totalorder %s30, %s33
      %p42 = scmp.eq.s32.totalorder %s25, 1
      %p43 = por %p41, %p42
      %p44 = scmp.ne.s32.totalorder %s33, %s34
      %p45 = scmp.eq.s32.totalorder %s25, 0
      %p46 = por %p44, %p45
      %p47 = scmp.ne.s32.totalorder %s33, %s34
      %p48 = scmp.eq.s32.totalorder %s26, 1
      %p49 = por %p47, %p48
      %p51 = scmp.ne.s32.totalorder %s34, %s50
      %p52 = scmp.eq.s32.totalorder %s26, 0
      %p53 = por %p51, %p52
      %s55 = sadd.s32 %s54, 1
      %p58 = scmp.eq.s32.totalorder %s20, 1
      %p59 = scmp.ne.s32.totalorder %s54, %s56
      %p60 = scmp.eq.s32.totalorder %s20, 0
      %p61 = por %p59, %p60
      %p62 = scmp.ne.s32.totalorder %s54, %s56
      %p63 = scmp.eq.s32.totalorder %s25, 1
      %p64 = por %p62, %p63
      %p65 = scmp.ne.s32.totalorder %s56, %s57
      %p66 = scmp.eq.s32.totalorder %s25, 0
      %p67 = por %p65, %p66
      %p68 = scmp.ne.s32.totalorder %s56, %s57
      %p69 = scmp.eq.s32.totalorder %s26, 1
      %p70 = por %p68, %p69
      %p72 = scmp.ne.s32.totalorder %s57, %s71
      %p73 = scmp.eq.s32.totalorder %s26, 0
      %p74 = por %p72, %p73
      %s76 = sadd.s32 %s75, 1
      %p79 = scmp.eq.s32.totalorder %s20, 1
      %p80 = scmp.ne.s32.totalorder %s75, %s77
      %p81 = scmp.eq.s32.totalorder %s20, 0
      %p82 = por %p80, %p81
      %p83 = scmp.ne.s32.totalorder %s75, %s77
      %p84 = scmp.eq.s32.totalorder %s25, 1
      %p85 = por %p83, %p84
      %p86 = scmp.ne.s32.totalorder %s77, %s78
      %p87 = scmp.eq.s32.totalorder %s25, 0
      %p88 = por %p86, %p87
      %p89 = scmp.ne.s32.totalorder %s77, %s78
      %p90 = scmp.eq.s32.totalorder %s26, 1
      %p91 = por %p89, %p90
      %p93 = scmp.ne.s32.totalorder %s78, %s92
      %p94 = scmp.eq.s32.totalorder %s26, 0
      %p95 = por %p93, %p94
      %s97 = sadd.s32 %s96, 1
      %p100 = scmp.eq.s32.totalorder %s20, 1
      %p101 = scmp.ne.s32.totalorder %s96, %s98
      %p102 = scmp.eq.s32.totalorder %s20, 0
      %p103 = por %p101, %p102
      %p104 = scmp.ne.s32.totalorder %s96, %s98
      %p105 = scmp.eq.s32.totalorder %s25, 1
      %p106 = por %p104, %p105
      %p107 = scmp.ne.s32.totalorder %s98, %s99
      %p108 = scmp.eq.s32.totalorder %s25, 0
      %p109 = por %p107, %p108
      %p110 = scmp.ne.s32.totalorder %s98, %s99
      %p111 = scmp.eq.s32.totalorder %s26, 1
      %p112 = por %p110, %p111
      %p114 = scmp.ne.s32.totalorder %s99, %s113
      %p115 = scmp.eq.s32.totalorder %s26, 0
      %p116 = por %p114, %p115
      %s118 = sadd.s32 %s117, 1
      %p121 = scmp.eq.s32.totalorder %s20, 1
      %p122 = scmp.ne.s32.totalorder %s117, %s119
      %p123 = scmp.eq.s32.totalorder %s20, 0
      %p124 = por %p122, %p123
      %p125 = scmp.ne.s32.totalorder %s117, %s119
      %p126 = scmp.eq.s32.totalorder %s25, 1
      %p127 = por %p125, %p126
      %p128 = scmp.ne.s32.totalorder %s119, %s120
      %p129 = scmp.eq.s32.totalorder %s25, 0
      %p130 = por %p128, %p129
      %p131 = scmp.ne.s32.totalorder %s119, %s120
      %p132 = scmp.eq.s32.totalorder %s26, 1
      %p133 = por %p131, %p132
      %p135 = scmp.ne.s32.totalorder %s120, %s134
      %p136 = scmp.eq.s32.totalorder %s26, 0
      %p137 = por %p135, %p136
      %s139 = sadd.s32 %s138, 1
      %p142 = scmp.eq.s32.totalorder %s20, 1
      %p143 = scmp.ne.s32.totalorder %s138, %s140
      %p144 = scmp.eq.s32.totalorder %s20, 0
      %p145 = por %p143, %p144
      %p146 = scmp.ne.s32.totalorder %s138, %s140
      %p147 = scmp.eq.s32.totalorder %s25, 1
      %p148 = por %p146, %p147
      %p149 = scmp.ne.s32.totalorder %s140, %s141
      %p150 = scmp.eq.s32.totalorder %s25, 0
      %p151 = por %p149, %p150
      %p152 = scmp.ne.s32.totalorder %s140, %s141
      %p153 = scmp.eq.s32.totalorder %s26, 1
      %p154 = por %p152, %p153
      %p156 = scmp.ne.s32.totalorder %s141, %s155
      %p157 = scmp.eq.s32.totalorder %s26, 0
      %p158 = por %p156, %p157
      %s160 = sadd.s32 %s159, 1
      %p163 = scmp.eq.s32.totalorder %s20, 1
      %p164 = scmp.ne.s32.totalorder %s159, %s161
      %p165 = scmp.eq.s32.totalorder %s20, 0
      %p166 = por %p164, %p165
      %p167 = scmp.ne.s32.totalorder %s159, %s161
      %p168 = scmp.eq.s32.totalorder %s25, 1
      %p169 = por %p167, %p168
      %p170 = scmp.ne.s32.totalorder %s161, %s162
      %p171 = scmp.eq.s32.totalorder %s25, 0
      %p172 = por %p170, %p171
      %p173 = scmp.ne.s32.totalorder %s161, %s162
      %p174 = scmp.eq.s32.totalorder %s26, 1
      %p175 = por %p173, %p174
      %p177 = scmp.ne.s32.totalorder %s162, %s176
      %p178 = scmp.eq.s32.totalorder %s26, 0
      %p179 = por %p177, %p178
      %s180 = ssub.s32 %s20, %s27
      %p181 = scmp.eq.s32.totalorder %s180, 0
      %s183 = sadd.s32 %s182, 1
      %s184 = scalar_select %p181, %s182, %s183
      %p187 = pneg %p181
      %p188 = scmp.eq.s32.totalorder %s20, 1
      %p189 = por %p187, %p188
      %p190 = scmp.ne.s32.totalorder %s182, %s185
      %p191 = scmp.eq.s32.totalorder %s20, 0
      %p192 = por %p190, %p191
      %p193 = scmp.ne.s32.totalorder %s182, %s185
      %p194 = scmp.eq.s32.totalorder %s25, 1
      %p195 = por %p193, %p194
      %p196 = scmp.ne.s32.totalorder %s185, %s186
      %p197 = scmp.eq.s32.totalorder %s25, 0
      %p198 = por %p196, %p197
      %p199 = scmp.ne.s32.totalorder %s185, %s186
      %p200 = scmp.eq.s32.totalorder %s26, 1
      %p201 = por %p199, %p200
      %p203 = scmp.ne.s32.totalorder %s186, %s202
      %p204 = scmp.eq.s32.totalorder %s26, 0
      %p205 = por %p203, %p204
      %p206 = scmp.le.s32.totalorder 1, %s20
      %p207 = scmp.lt.s32.totalorder %s20, 3
      %p208 = pnand %p206, %p207
      %p209 = pneg %p208
      // Predicated region
      $region9: #{tpu_custom_call.1} parent=5 // pred_check
        _
      $region10: #{tpu_custom_call.1} parent=5 // pred_check_branch
        %211 = sbr.rel (%p208) target = $region12
      $region11: #{tpu_custom_call.1} parent=5 // pred_region
        %s212 = ssub.s32 %s20, 1
        // Predicated region
        $region13: #{tpu_custom_call.1} parent=11 // pred_check
          %p213 = pneg %p67
        $region14: #{tpu_custom_call.1} parent=11 // pred_check_branch
          %215 = sbr.rel (%p213) target = $region16
        $region15: #{tpu_custom_call.1} parent=11 // pred_region
          _
        $region16: #{tpu_custom_call.1} parent=11 // pred_fallthru
          _
        // Predicated region
        $region17: #{tpu_custom_call.1} parent=11 // pred_check
          %p216 = pneg %p88
        $region18: #{tpu_custom_call.1} parent=11 // pred_check_branch
          %218 = sbr.rel (%p216) target = $region20
        $region19: #{tpu_custom_call.1} parent=11 // pred_region
          _
        $region20: #{tpu_custom_call.1} parent=11 // pred_fallthru
          _
        // Predicated region
        $region21: #{tpu_custom_call.1} parent=11 // pred_check
          %p219 = pneg %p109
        $region22: #{tpu_custom_call.1} parent=11 // pred_check_branch
          %221 = sbr.rel (%p219) target = $region24
        $region23: #{tpu_custom_call.1} parent=11 // pred_region
          _
        $region24: #{tpu_custom_call.1} parent=11 // pred_fallthru
          _
        // Predicated region
        $region25: #{tpu_custom_call.1} parent=11 // pred_check
          %p222 = pneg %p130
        $region26: #{tpu_custom_call.1} parent=11 // pred_check_branch
          %224 = sbr.rel (%p222) target = $region28
        $region27: #{tpu_custom_call.1} parent=11 // pred_region
          _
        $region28: #{tpu_custom_call.1} parent=11 // pred_fallthru
          _
        // Predicated region
        $region29: #{tpu_custom_call.1} parent=11 // pred_check
          %p225 = pneg %p151
        $region30: #{tpu_custom_call.1} parent=11 // pred_check_branch
          %227 = sbr.rel (%p225) target = $region32
        $region31: #{tpu_custom_call.1} parent=11 // pred_region
          _
        $region32: #{tpu_custom_call.1} parent=11 // pred_fallthru
          _
        // Predicated region
        $region33: #{tpu_custom_call.1} parent=11 // pred_check
          %p228 = pneg %p172
        $region34: #{tpu_custom_call.1} parent=11 // pred_check_branch
          %230 = sbr.rel (%p228) target = $region36
        $region35: #{tpu_custom_call.1} parent=11 // pred_region
          _
        $region36: #{tpu_custom_call.1} parent=11 // pred_fallthru
          _
      $region12: #{tpu_custom_call.1} parent=5 // pred_fallthru
        _
      %p231 = scmp.lt.s32.totalorder %s20, 2
      // Predicated region
      $region37: #{tpu_custom_call.1} parent=5 // pred_check
        %p232 = pneg %p231
      $region38: #{tpu_custom_call.1} parent=5 // pred_check_branch
        %234 = sbr.rel (%p232) target = $region40
      $region39: #{tpu_custom_call.1} parent=5 // pred_region
        // Predicated region
        $region41: #{tpu_custom_call.1} parent=39 // pred_check
          %p235 = pneg %p40
        $region42: #{tpu_custom_call.1} parent=39 // pred_check_branch
          %237 = sbr.rel (%p235) target = $region44
        $region43: #{tpu_custom_call.1} parent=39 // pred_region
          %s238 = sand.u32 %s30, 1
          %s239 = scalar_lea.sflag [#allocation4], %s238
          %s240 = sand.u32 %s30, 1
          %s241 = smul.addr %s240, 128
          %s242 = scalar_lea.vmem [#allocation3], %s241
          %244 = vsyncadd %s239, 0
          %s245 = smul.addr %s20, 16
          %s246 = smul.addr %s245, 8
          %s247 = scalar_lea.hbm %s0, %s246
          %s248 = sshll.u32 %s247, 4
          %s249 = int_to_ptr.hbm [resolvable:$true] %s248
          %s250 = sshll.u32 %s242, 4
          %s251 = int_to_ptr.vmem [resolvable:$true] %s250
          %256 = dma.hbm_to_vmem [thread:$0]  %s249, 2048, %s251, %s239, 512, 512, 32
        $region44: #{tpu_custom_call.1} parent=39 // pred_fallthru
          _
      $region40: #{tpu_custom_call.1} parent=5 // pred_fallthru
        _
      %p257 = scmp.le.s32.totalorder 1, %s20
      %p258 = scmp.lt.s32.totalorder %s20, 3
      %p259 = pnand %p257, %p258
      %p260 = pneg %p259
      // Predicated region
      $region45: #{tpu_custom_call.1} parent=5 // pred_check
        _
      $region46: #{tpu_custom_call.1} parent=5 // pred_check_branch
        %262 = sbr.rel (%p259) target = $region48
      $region47: #{tpu_custom_call.1} parent=5 // pred_region
        %s263 = ssub.s32 %s20, 1
        %s264 = sand.u32 %s33, 1
        %s265 = scalar_lea.sflag [#allocation4], %s264
        %s266 = sand.u32 %s33, 1
        %s267 = smul.addr %s266, 128
        %s268 = scalar_lea.vmem [#allocation3], %s267
        // Predicated region
        $region49: #{tpu_custom_call.1} parent=47 // pred_check
          %p269 = pneg %p46
        $region50: #{tpu_custom_call.1} parent=47 // pred_check_branch
          %271 = sbr.rel (%p269) target = $region52
        $region51: #{tpu_custom_call.1} parent=47 // pred_region
          %273 = dma.done %s265, 2048
        $region52: #{tpu_custom_call.1} parent=47 // pred_fallthru
          _
        %s274 = sand.u32 %s33, 1
        %s275 = scalar_lea.sflag [#allocation4], %s274
        %s276 = sand.u32 %s33, 1
        %s277 = smul.addr %s276, 128
        %s278 = scalar_lea.vmem [#allocation3], %s277
        %p279 = pneg %p46
        %p280 = pneg %p43
        %p281 = pneg %p67
        %p282 = pneg %p64
        %p283 = pneg %p88
        %p284 = pneg %p85
        %p285 = pneg %p109
        %p286 = pneg %p106
        %p287 = pneg %p130
        %p288 = pneg %p127
        %p289 = pneg %p151
        %p290 = pneg %p148
        %p291 = pneg %p172
        %p292 = pneg %p169
        %p293 = pneg %p198
        %p294 = pneg %p195
        %s295 = sand.u32 %s185, 1
        %s296 = scalar_lea.sflag [#allocation5], %s295
        %s297 = sand.u32 %s185, 1
        %s298 = smul.addr %s297, 128
        %s299 = scalar_lea.vmem [#allocation6], %s298
        %v300 = vld [vmem:[%s5] sm:$0xff]
        %v301 = vld [vmem:[%s5 + $0x8] sm:$0xff]
        %v302 = vld [vmem:[%s5 + $0x10] sm:$0xff]
        %v303 = vld [vmem:[%s5 + $0x18] sm:$0xff]
        %s304 = sld [smem:[#allocation2]]
        %v305 = vld [vmem:[%s268] sm:$0xff]
        %v306 = vld [vmem:[%s268 + $0x8] sm:$0xff]
        %v307 = vld [vmem:[%s268 + $0x10] sm:$0xff]
        %v308 = vld [vmem:[%s268 + $0x18] sm:$0xff]
        %v309 = vld [vmem:[%s268 + $0x20] sm:$0xff]
        %v310 = vld [vmem:[%s268 + $0x28] sm:$0xff]
        %v311 = vld [vmem:[%s268 + $0x30] sm:$0xff]
        %v312 = vld [vmem:[%s268 + $0x38] sm:$0xff]
        %v313 = vld [vmem:[%s268 + $0x40] sm:$0xff]
        %v314 = vld [vmem:[%s268 + $0x48] sm:$0xff]
        %v315 = vld [vmem:[%s268 + $0x50] sm:$0xff]
        %v316 = vld [vmem:[%s268 + $0x58] sm:$0xff]
        %v317 = vld [vmem:[%s268 + $0x60] sm:$0xff]
        %v318 = vld [vmem:[%s268 + $0x68] sm:$0xff]
        %v319 = vld [vmem:[%s268 + $0x70] sm:$0xff]
        %v320 = vld [vmem:[%s268 + $0x78] sm:$0xff]
        %v321 = vadd.f32 %v305, %v306
        %v322 = vadd.f32 %v321, %v307
        %v323 = vadd.f32 %v322, %v308
        %324 = vadd.xlane.f32.xlu0 %v323
        %v325 = vpop.xlane.xlu0 %324
        %v326 = vadd.f32 %v309, %v310
        %v327 = vadd.f32 %v326, %v311
        %v328 = vadd.f32 %v327, %v312
        %329 = vadd.xlane.f32.xlu0 %v328
        %v330 = vpop.xlane.xlu0 %329
        %v331 = vadd.f32 %v313, %v314
        %v332 = vadd.f32 %v331, %v315
        %v333 = vadd.f32 %v332, %v316
        %334 = vadd.xlane.f32.xlu0 %v333
        %v335 = vpop.xlane.xlu0 %334
        %v336 = vadd.f32 %v317, %v318
        %v337 = vadd.f32 %v336, %v319
        %v338 = vadd.f32 %v337, %v320
        %339 = vadd.xlane.f32.xlu0 %v338
        %v340 = vpop.xlane.xlu0 %339
        %v341 = vadd.f32 %v325, 0.0
        %v342 = vadd.f32 %v330, 0.0
        %v343 = vadd.f32 %v335, 0.0
        %v344 = vadd.f32 %v340, 0.0
        %v345 = vmul.f32 %v341, 0.001953125
        %v346 = vmul.f32 %v342, 0.001953125
        %v347 = vmul.f32 %v343, 0.001953125
        %v348 = vmul.f32 %v344, 0.001953125
        %v349 = vld [vmem:[%s1] sm:$0xff]
        %v350 = vld [vmem:[%s1 + $0x8] sm:$0xff]
        %v351 = vld [vmem:[%s1 + $0x10] sm:$0xff]
        %v352 = vld [vmem:[%s1 + $0x18] sm:$0xff]
        %v353 = vmul.f32 %v349, %v345
        %v354 = vmul.f32 %v350, %v346
        %v355 = vmul.f32 %v351, %v347
        %v356 = vmul.f32 %v352, %v348
        %vm357 = vcmask 15360
        %v358 = vsel %vm357, %v353, 0.0
        %v359 = vsel %vm357, %v354, 0.0
        %v360 = vadd.f32 %v358, %v359
        %v361 = vsel %vm357, %v355, 0.0
        %v362 = vadd.f32 %v360, %v361
        %v363 = vsel %vm357, %v356, 0.0
        %v364 = vadd.f32 %v362, %v363
        %v365 = vrot.slane %v364, 4
        %v366 = vadd.f32 %v364, %v365
        %v367 = vrot.slane %v366, 2
        %v368 = vadd.f32 %v366, %v367
        %v369 = vrot.slane %v368, 1
        %v370 = vadd.f32 %v368, %v369
        %v371 = vld [vmem:[%s2] sm:$0x1]
        %v372 = vadd.f32 %v370, %v371
        %v373 = vmax.f32 %v372, 0.0
        %v374 = vld [vmem:[%s3] sm:$0xff]
        %v375 = vld [vmem:[%s3 + $0x8] sm:$0xff]
        %v376 = vld [vmem:[%s3 + $0x10] sm:$0xff]
        %v377 = vld [vmem:[%s3 + $0x18] sm:$0xff]
        %v378 = vperm.slane %v373, 0
        %v379 = vmul.f32 %v374, %v378
        %v380 = vmul.f32 %v375, %v378
        %v381 = vmul.f32 %v376, %v378
        %v382 = vmul.f32 %v377, %v378
        %v383 = vsel %vm357, %v379, 0.0
        %384 = vadd.xlane.f32.xlu0 %v383
        %v385 = vpop.xlane.xlu0 %384
        %v386 = vsel %vm357, %v380, 0.0
        %387 = vadd.xlane.f32.xlu0 %v386
        %v388 = vpop.xlane.xlu0 %387
        %v389 = vsel %vm357, %v381, 0.0
        %390 = vadd.xlane.f32.xlu0 %v389
        %v391 = vpop.xlane.xlu0 %390
        %v392 = vsel %vm357, %v382, 0.0
        %393 = vadd.xlane.f32.xlu0 %v392
        %v394 = vpop.xlane.xlu0 %393
        %v395 = vld [vmem:[%s4] sm:$0xff]
        %v396 = vld [vmem:[%s4 + $0x8] sm:$0xff]
        %v397 = vld [vmem:[%s4 + $0x10] sm:$0xff]
        %v398 = vld [vmem:[%s4 + $0x18] sm:$0xff]
        %v399 = vadd.f32 %v385, %v395
        %v400 = vadd.f32 %v388, %v396
        %v401 = vadd.f32 %v391, %v397
        %v402 = vadd.f32 %v394, %v398
        %v403 = vxor.u32 %v399, 2147483648
        %v404 = vxor.u32 %v400, 2147483648
        %v405 = vxor.u32 %v401, 2147483648
        %v406 = vxor.u32 %v402, 2147483648
        %v407 = vmul.f32 %v403, 1.442695
        %v408 = vpow.pop %v407
        %v409 = vmul.f32 %v404, 1.442695
        %v410 = vpow.pop %v409
        %v411 = vmul.f32 %v405, 1.442695
        %v412 = vpow.pop %v411
        %v413 = vmul.f32 %v406, 1.442695
        %v414 = vpow.pop %v413
        %v415 = vadd.f32 %v408, 1.0
        %v416 = vadd.f32 %v410, 1.0
        %v417 = vadd.f32 %v412, 1.0
        %v418 = vadd.f32 %v414, 1.0
        %v419 = vrcp.pop %v415
        %v420 = vmul.f32 %v415, %v419
        %v421 = vsub.f32 1.0, %v420
        %v422 = vmul.f32 %v419, %v421
        %v423 = vadd.f32 %v419, %v422
        %vm424 = vweird.f32 %v415
        %vm425 = vweird.f32 %v419
        %vm426 = vmor %vm424, %vm425
        %v427 = vsel %vm426, %v419, %v423
        %v428 = vand.u32 2147483647, %v415
        %vm429 = vcmp.eq.f32.partialorder %v428, 8.507059e+37
        %v430 = vand.u32 %v415, 2147483648
        %v431 = vor.u32 1.1754944e-38, %v430
        %v432 = vsel %vm429, %v431, %v427
        %v433 = vmul.f32 1.0, %v432
        %v434 = vrcp.pop %v416
        %v435 = vmul.f32 %v416, %v434
        %v436 = vsub.f32 1.0, %v435
        %v437 = vmul.f32 %v434, %v436
        %v438 = vadd.f32 %v434, %v437
        %vm439 = vweird.f32 %v416
        %vm440 = vweird.f32 %v434
        %vm441 = vmor %vm439, %vm440
        %v442 = vsel %vm441, %v434, %v438
        %v443 = vand.u32 2147483647, %v416
        %vm444 = vcmp.eq.f32.partialorder %v443, 8.507059e+37
        %v445 = vand.u32 %v416, 2147483648
        %v446 = vor.u32 1.1754944e-38, %v445
        %v447 = vsel %vm444, %v446, %v442
        %v448 = vmul.f32 1.0, %v447
        %v449 = vrcp.pop %v417
        %v450 = vmul.f32 %v417, %v449
        %v451 = vsub.f32 1.0, %v450
        %v452 = vmul.f32 %v449, %v451
        %v453 = vadd.f32 %v449, %v452
        %vm454 = vweird.f32 %v417
        %vm455 = vweird.f32 %v449
        %vm456 = vmor %vm454, %vm455
        %v457 = vsel %vm456, %v449, %v453
        %v458 = vand.u32 2147483647, %v417
        %vm459 = vcmp.eq.f32.partialorder %v458, 8.507059e+37
        %v460 = vand.u32 %v417, 2147483648
        %v461 = vor.u32 1.1754944e-38, %v460
        %v462 = vsel %vm459, %v461, %v457
        %v463 = vmul.f32 1.0, %v462
        %v464 = vrcp.pop %v418
        %v465 = vmul.f32 %v418, %v464
        %v466 = vsub.f32 1.0, %v465
        %v467 = vmul.f32 %v464, %v466
        %v468 = vadd.f32 %v464, %v467
        %vm469 = vweird.f32 %v418
        %vm470 = vweird.f32 %v464
        %vm471 = vmor %vm469, %vm470
        %v472 = vsel %vm471, %v464, %v468
        %v473 = vand.u32 2147483647, %v418
        %vm474 = vcmp.eq.f32.partialorder %v473, 8.507059e+37
        %v475 = vand.u32 %v418, 2147483648
        %v476 = vor.u32 1.1754944e-38, %v475
        %v477 = vsel %vm474, %v476, %v472
        %v478 = vmul.f32 1.0, %v477
        %480 = vset.pattern.permute.xlu0 0
        %481 = vperm.xlu0 %480, %v300
        %v482 = vpop.permute.xlu0 %481
        %485 = vset.pattern.permute.xlu0 0
        %486 = vperm.xlu0 %485, %v301
        %v487 = vpop.permute.xlu0 %486
        %490 = vset.pattern.permute.xlu0 0
        %491 = vperm.xlu0 %490, %v302
        %v492 = vpop.permute.xlu0 %491
        %495 = vset.pattern.permute.xlu0 0
        %496 = vperm.xlu0 %495, %v303
        %v497 = vpop.permute.xlu0 %496
        %v499 = vmul.f32 %v305, %v482
        %v500 = vmul.f32 %v306, %v482
        %v501 = vmul.f32 %v307, %v482
        %v502 = vmul.f32 %v308, %v482
        %v503 = vmul.f32 %v309, %v487
        %v504 = vmul.f32 %v310, %v487
        %v505 = vmul.f32 %v311, %v487
        %v506 = vmul.f32 %v312, %v487
        %v507 = vmul.f32 %v313, %v492
        %v508 = vmul.f32 %v314, %v492
        %v509 = vmul.f32 %v315, %v492
        %v510 = vmul.f32 %v316, %v492
        %v511 = vmul.f32 %v317, %v497
        %v512 = vmul.f32 %v318, %v497
        %v513 = vmul.f32 %v319, %v497
        %v514 = vmul.f32 %v320, %v497
        %v515 = vadd.f32 %v499, %v503
        %v516 = vadd.f32 %v515, %v507
        %v517 = vadd.f32 %v516, %v511
        %v518 = vrot.slane %v517, 4
        %v519 = vadd.f32 %v517, %v518
        %v520 = vrot.slane %v519, 2
        %v521 = vadd.f32 %v519, %v520
        %v522 = vrot.slane %v521, 1
        %v523 = vadd.f32 %v521, %v522
        %v524 = vadd.f32 %v500, %v504
        %v525 = vadd.f32 %v524, %v508
        %v526 = vadd.f32 %v525, %v512
        %v527 = vrot.slane %v526, 4
        %v528 = vadd.f32 %v526, %v527
        %v529 = vrot.slane %v528, 2
        %v530 = vadd.f32 %v528, %v529
        %v531 = vrot.slane %v530, 1
        %v532 = vadd.f32 %v530, %v531
        %v533 = vadd.f32 %v501, %v505
        %v534 = vadd.f32 %v533, %v509
        %v535 = vadd.f32 %v534, %v513
        %v536 = vrot.slane %v535, 4
        %v537 = vadd.f32 %v535, %v536
        %v538 = vrot.slane %v537, 2
        %v539 = vadd.f32 %v537, %v538
        %v540 = vrot.slane %v539, 1
        %v541 = vadd.f32 %v539, %v540
        %v542 = vadd.f32 %v502, %v506
        %v543 = vadd.f32 %v542, %v510
        %v544 = vadd.f32 %v543, %v514
        %v545 = vrot.slane %v544, 4
        %v546 = vadd.f32 %v544, %v545
        %v547 = vrot.slane %v546, 2
        %v548 = vadd.f32 %v546, %v547
        %v549 = vrot.slane %v548, 1
        %v550 = vadd.f32 %v548, %v549
        %v551 = vstv %s304
        %v552 = vadd.f32 %v523, %v551
        %v553 = vadd.f32 %v532, %v551
        %v554 = vadd.f32 %v541, %v551
        %v555 = vadd.f32 %v550, %v551
        %v556 = vxor.u32 %v552, 2147483648
        %v557 = vxor.u32 %v553, 2147483648
        %v558 = vxor.u32 %v554, 2147483648
        %v559 = vxor.u32 %v555, 2147483648
        %v560 = vmul.f32 %v556, 1.442695
        %v561 = vpow.pop %v560
        %v562 = vmul.f32 %v557, 1.442695
        %v563 = vpow.pop %v562
        %v564 = vmul.f32 %v558, 1.442695
        %v565 = vpow.pop %v564
        %v566 = vmul.f32 %v559, 1.442695
        %v567 = vpow.pop %v566
        %v568 = vadd.f32 %v561, 1.0
        %v569 = vadd.f32 %v563, 1.0
        %v570 = vadd.f32 %v565, 1.0
        %v571 = vadd.f32 %v567, 1.0
        %v572 = vrcp.pop %v568
        %v573 = vmul.f32 %v568, %v572
        %v574 = vsub.f32 1.0, %v573
        %v575 = vmul.f32 %v572, %v574
        %v576 = vadd.f32 %v572, %v575
        %vm577 = vweird.f32 %v568
        %vm578 = vweird.f32 %v572
        %vm579 = vmor %vm577, %vm578
        %v580 = vsel %vm579, %v572, %v576
        %v581 = vand.u32 2147483647, %v568
        %vm582 = vcmp.eq.f32.partialorder %v581, 8.507059e+37
        %v583 = vand.u32 %v568, 2147483648
        %v584 = vor.u32 1.1754944e-38, %v583
        %v585 = vsel %vm582, %v584, %v580
        %v586 = vmul.f32 1.0, %v585
        %v587 = vrcp.pop %v569
        %v588 = vmul.f32 %v569, %v587
        %v589 = vsub.f32 1.0, %v588
        %v590 = vmul.f32 %v587, %v589
        %v591 = vadd.f32 %v587, %v590
        %vm592 = vweird.f32 %v569
        %vm593 = vweird.f32 %v587
        %vm594 = vmor %vm592, %vm593
        %v595 = vsel %vm594, %v587, %v591
        %v596 = vand.u32 2147483647, %v569
        %vm597 = vcmp.eq.f32.partialorder %v596, 8.507059e+37
        %v598 = vand.u32 %v569, 2147483648
        %v599 = vor.u32 1.1754944e-38, %v598
        %v600 = vsel %vm597, %v599, %v595
        %v601 = vmul.f32 1.0, %v600
        %v602 = vrcp.pop %v570
        %v603 = vmul.f32 %v570, %v602
        %v604 = vsub.f32 1.0, %v603
        %v605 = vmul.f32 %v602, %v604
        %v606 = vadd.f32 %v602, %v605
        %vm607 = vweird.f32 %v570
        %vm608 = vweird.f32 %v602
        %vm609 = vmor %vm607, %vm608
        %v610 = vsel %vm609, %v602, %v606
        %v611 = vand.u32 2147483647, %v570
        %vm612 = vcmp.eq.f32.partialorder %v611, 8.507059e+37
        %v613 = vand.u32 %v570, 2147483648
        %v614 = vor.u32 1.1754944e-38, %v613
        %v615 = vsel %vm612, %v614, %v610
        %v616 = vmul.f32 1.0, %v615
        %v617 = vrcp.pop %v571
        %v618 = vmul.f32 %v571, %v617
        %v619 = vsub.f32 1.0, %v618
        %v620 = vmul.f32 %v617, %v619
        %v621 = vadd.f32 %v617, %v620
        %vm622 = vweird.f32 %v571
        %vm623 = vweird.f32 %v617
        %vm624 = vmor %vm622, %vm623
        %v625 = vsel %vm624, %v617, %v621
        %v626 = vand.u32 2147483647, %v571
        %vm627 = vcmp.eq.f32.partialorder %v626, 8.507059e+37
        %v628 = vand.u32 %v571, 2147483648
        %v629 = vor.u32 1.1754944e-38, %v628
        %v630 = vsel %vm627, %v629, %v625
        %v631 = vmul.f32 1.0, %v630
        %633 = vset.pattern.permute.xlu0 0
        %634 = vperm.xlu0 %633, %v433
        %v635 = vpop.permute.xlu0 %634
        %638 = vset.pattern.permute.xlu0 0
        %639 = vperm.xlu0 %638, %v448
        %v640 = vpop.permute.xlu0 %639
        %643 = vset.pattern.permute.xlu0 0
        %644 = vperm.xlu0 %643, %v463
        %v645 = vpop.permute.xlu0 %644
        %648 = vset.pattern.permute.xlu0 0
        %649 = vperm.xlu0 %648, %v478
        %v650 = vpop.permute.xlu0 %649
        %v652 = vadd.f32 %v635, %v586
        %v653 = vadd.f32 %v635, %v601
        %v654 = vadd.f32 %v635, %v616
        %v655 = vadd.f32 %v635, %v631
        %v656 = vadd.f32 %v640, %v586
        %v657 = vadd.f32 %v640, %v601
        %v658 = vadd.f32 %v640, %v616
        %v659 = vadd.f32 %v640, %v631
        %v660 = vadd.f32 %v645, %v586
        %v661 = vadd.f32 %v645, %v601
        %v662 = vadd.f32 %v645, %v616
        %v663 = vadd.f32 %v645, %v631
        %v664 = vadd.f32 %v650, %v586
        %v665 = vadd.f32 %v650, %v601
        %v666 = vadd.f32 %v650, %v616
        %v667 = vadd.f32 %v650, %v631
        %v668 = vmul.f32 %v305, %v652
        %v669 = vmul.f32 %v306, %v653
        %v670 = vmul.f32 %v307, %v654
        %v671 = vmul.f32 %v308, %v655
        %v672 = vmul.f32 %v309, %v656
        %v673 = vmul.f32 %v310, %v657
        %v674 = vmul.f32 %v311, %v658
        %v675 = vmul.f32 %v312, %v659
        %v676 = vmul.f32 %v313, %v660
        %v677 = vmul.f32 %v314, %v661
        %v678 = vmul.f32 %v315, %v662
        %v679 = vmul.f32 %v316, %v663
        %v680 = vmul.f32 %v317, %v664
        %v681 = vmul.f32 %v318, %v665
        %v682 = vmul.f32 %v319, %v666
        %v683 = vmul.f32 %v320, %v667
        %684 = vst [vmem:[%s299] sm:$0xff] %v668
        %685 = vst [vmem:[%s299 + $0x8] sm:$0xff] %v669
        %686 = vst [vmem:[%s299 + $0x10] sm:$0xff] %v670
        %687 = vst [vmem:[%s299 + $0x18] sm:$0xff] %v671
        %688 = vst [vmem:[%s299 + $0x20] sm:$0xff] %v672
        %689 = vst [vmem:[%s299 + $0x28] sm:$0xff] %v673
        %690 = vst [vmem:[%s299 + $0x30] sm:$0xff] %v674
        %691 = vst [vmem:[%s299 + $0x38] sm:$0xff] %v675
        %692 = vst [vmem:[%s299 + $0x40] sm:$0xff] %v676
        %693 = vst [vmem:[%s299 + $0x48] sm:$0xff] %v677
        %694 = vst [vmem:[%s299 + $0x50] sm:$0xff] %v678
        %695 = vst [vmem:[%s299 + $0x58] sm:$0xff] %v679
        %696 = vst [vmem:[%s299 + $0x60] sm:$0xff] %v680
        %697 = vst [vmem:[%s299 + $0x68] sm:$0xff] %v681
        %698 = vst [vmem:[%s299 + $0x70] sm:$0xff] %v682
        %699 = vst [vmem:[%s299 + $0x78] sm:$0xff] %v683
        %s700 = sand.u32 %s185, 1
        %s701 = scalar_lea.sflag [#allocation5], %s700
        %s702 = sand.u32 %s185, 1
        %s703 = smul.addr %s702, 128
        %s704 = scalar_lea.vmem [#allocation6], %s703
        // Predicated region
        $region53: #{tpu_custom_call.1} parent=47 // pred_check
          %p705 = pneg %p195
        $region54: #{tpu_custom_call.1} parent=47 // pred_check_branch
          %707 = sbr.rel (%p705) target = $region56
        $region55: #{tpu_custom_call.1} parent=47 // pred_region
          %709 = vsyncadd %s701, 0
          %s710 = smul.addr %s25, 16
          %s711 = smul.addr %s710, 8
          %s712 = scalar_lea.hbm %s7, %s711
          %s713 = sshll.u32 %s704, 4
          %s714 = int_to_ptr.vmem [resolvable:$true] %s713
          %s715 = sshll.u32 %s712, 4
          %s716 = int_to_ptr.hbm [resolvable:$true] %s715
          %721 = dma.vmem_to_hbm [thread:$0]  %s714, 2048, %s716, %s701, 512, 512, 32
        $region56: #{tpu_custom_call.1} parent=47 // pred_fallthru
          _
      $region48: #{tpu_custom_call.1} parent=5 // pred_fallthru
        _
      %p722 = scmp.le.s32.totalorder 2, %s20
      // Predicated region
      $region57: #{tpu_custom_call.1} parent=5 // pred_check
        %p723 = pneg %p722
      $region58: #{tpu_custom_call.1} parent=5 // pred_check_branch
        %725 = sbr.rel (%p723) target = $region60
      $region59: #{tpu_custom_call.1} parent=5 // pred_region
        %s726 = ssub.s32 %s20, 2
        // Predicated region
        $region61: #{tpu_custom_call.1} parent=59 // pred_check
          %p727 = pneg %p201
        $region62: #{tpu_custom_call.1} parent=59 // pred_check_branch
          %729 = sbr.rel (%p727) target = $region64
        $region63: #{tpu_custom_call.1} parent=59 // pred_region
          %s730 = sand.u32 %s186, 1
          %s731 = scalar_lea.sflag [#allocation5], %s730
          %s732 = sand.u32 %s186, 1
          %s733 = smul.addr %s732, 128
          %s734 = scalar_lea.vmem [#allocation6], %s733
          %736 = dma.done %s731, 2048
        $region64: #{tpu_custom_call.1} parent=59 // pred_fallthru
          _
      $region60: #{tpu_custom_call.1} parent=5 // pred_fallthru
        _
    $region6: #{tpu_custom_call.1} parent=1 // loop_footer
      %s24 = sadd.s32 1, %s20
    $region7: #{tpu_custom_call.1} parent=1 // loop_footer_branch
      %19 = sbr.rel target = $region3
    $region8: #{tpu_custom_call.1} parent=1 // loop_exit
      _
    %737 = vsyncpa [#allocation4], 1
    %s738 = scalar_lea.sflag [#allocation4], 1
    %739 = vsyncpa %s738, 1
    %740 = vsyncpa [#allocation5], 1
    %s741 = scalar_lea.sflag [#allocation5], 1
    %742 = vsyncpa %s741, 1

</llo_original>
